<compile_context>
chip_gen: v5e
topology: v5e:2x2
jax: 0.10.0
libtpu: 0.0.40
codegen_flags: <defaults>
</compile_context>

<pallas_src>
import functools
import math

import jax
import jax.numpy as jnp
from jax import lax
from jax.experimental import pallas as pl
from jax.experimental.pallas import tpu as pltpu

# Large finite stand-in for -inf (keeps exp/max arithmetic NaN-free in the online softmax).
NEG_INF = -0.7 * float(jnp.finfo(jnp.float32).max)


def _round_up(x, m):
    return (x + m - 1) // m * m


def _sdpa_flash_kernel(*args, scale, has_mask, has_kv_pad, kv_len, tk_blk):
    if has_mask:
        (bmap_ref, q_ref, k_ref, v_ref, mask_ref,
         o_ref, m_ref, l_ref, acc_ref) = args
    else:
        q_ref, k_ref, v_ref, o_ref, m_ref, l_ref, acc_ref = args
        bmap_ref = mask_ref = None

    kv_idx = pl.program_id(2)
    n_kv = pl.num_programs(2)

    @pl.when(kv_idx == 0)
    def _init():
        m_ref[...] = jnp.full(m_ref.shape, NEG_INF, dtype=jnp.float32)
        l_ref[...] = jnp.zeros(l_ref.shape, dtype=jnp.float32)
        acc_ref[...] = jnp.zeros(acc_ref.shape, dtype=jnp.float32)

    def _update(mask_pad_cols):
        q = q_ref[0]                                  # (tq, D) in input dtype (MXU-native)
        k = k_ref[0]                                  # (tk, D)
        v = v_ref[0]                                  # (tk, Dv)
        # Fold 1/sqrt(d_k) into q: tq*D muls instead of tq*tk per kv step.
        q = q * jnp.asarray(scale, q.dtype)

        # NT matmul: contract D of q and k directly (no k.T on the XLU), f32 accumulate.
        s = lax.dot_general(q, k, (((1,), (1,)), ((), ())),
                            preferred_element_type=jnp.float32)

        if has_mask:
            s = jnp.where(mask_ref[0] != 0, NEG_INF, s)
        if mask_pad_cols:
            # Mask out key columns that only exist because of padding (last kv tile only).
            col = kv_idx * tk_blk + lax.broadcasted_iota(jnp.int32, s.shape, 1)
            s = jnp.where(col < kv_len, s, NEG_INF)

        # Online softmax update (all statistics in f32).
        m_prev = m_ref[...]                           # (tq, 1)
        m_new = jnp.maximum(m_prev, jnp.max(s, axis=-1, keepdims=True))
        alpha = jnp.exp(m_prev - m_new)               # rescale factor for old stats
        p = jnp.exp(s - m_new)                        # (tq, tk) f32

        l_ref[...] = alpha * l_ref[...] + jnp.sum(p, axis=-1, keepdims=True)
        acc_ref[...] = alpha * acc_ref[...] + jnp.dot(
            p.astype(v.dtype), v, preferred_element_type=jnp.float32)
        m_ref[...] = m_new

    if has_mask:
        # Skip tiles whose entries are all masked (per-tile map scalar-prefetched into SMEM).
        b_idx = pl.program_id(0)
        q_idx = pl.program_id(1)
        n_q = pl.num_programs(1)
        flat = (b_idx * n_q + q_idx) * n_kv + kv_idx
        pl.when(bmap_ref[flat] != 0)(lambda: _update(False))
    elif has_kv_pad:
        # Only the last kv tile has padded key columns; interior steps skip the pad cleanup.
        pl.when(kv_idx == n_kv - 1)(lambda: _update(True))
        pl.when(kv_idx != n_kv - 1)(lambda: _update(False))
    else:
        _update(False)

    @pl.when(kv_idx == n_kv - 1)
    def _finalize():
        inv_l = pl.reciprocal(l_ref[...], approx=True)   # EUP vrcp — frees the VALU
        o_ref[0] = (acc_ref[...] * inv_l).astype(o_ref.dtype)


def scaled_dot_product_attention(q, k, v, mask=None, *, tq=256, tk=512,
                                 use_bf16=False):
    """Pallas flash-style implementation of ScaledDotProductAttention.forward.

    q: (B, Lq, D), k: (B, Lk, D), v: (B, Lk, Dv), mask: optional bool/int (B, Lq, Lk)
    with True = masked (torch.masked_fill convention). Returns (B, Lq, Dv) in q.dtype.
    use_bf16=True casts f32 q/k/v to bf16 for the MXU (softmax stats / output stay f32).
    """
    B, Lq, D = q.shape
    _, Lk, Dk = k.shape
    Dv = v.shape[-1]
    assert D == Dk, "q/k feature dims must match"
    scale = 1.0 / math.sqrt(D)  # scale uses the ORIGINAL d_k

    out_dtype = q.dtype
    if use_bf16 and q.dtype == jnp.float32:
        q = q.astype(jnp.bfloat16)
        k = k.astype(jnp.bfloat16)
        v = v.astype(jnp.bfloat16)

    # --- tile sizing (D / Dv deliberately left unpadded) ---
    tq_eff = _round_up(Lq, 8) if Lq <= tq else tq
    lq_pad = _round_up(Lq, tq_eff)
    n_q = lq_pad // tq_eff
    if B * n_q < 2 and Lq >= 256:
        # Keep >= 2 parallel grid units so dual-TensorCore chips (v7x) don't idle a core.
        tq_eff = _round_up(-(-Lq // 2), 8)
        lq_pad = _round_up(Lq, tq_eff)
        n_q = lq_pad // tq_eff

    tk_eff = _round_up(Lk, 128) if Lk <= tk else tk
    lk_pad = _round_up(Lk, tk_eff)
    n_kv = lk_pad // tk_eff
    has_kv_pad = lk_pad != Lk

    qp = q if lq_pad == Lq else jnp.pad(q, ((0, 0), (0, lq_pad - Lq), (0, 0)))
    kp = k if lk_pad == Lk else jnp.pad(k, ((0, 0), (0, lk_pad - Lk), (0, 0)))
    vp = v if lk_pad == Lk else jnp.pad(v, ((0, 0), (0, lk_pad - Lk), (0, 0)))

    has_mask = mask is not None
    if has_mask:
        mp = mask.astype(jnp.int8)
        if lq_pad != Lq or lk_pad != Lk:
            # Fold key/query padding into the mask: pad value 1 == masked.
            mp = jnp.pad(mp, ((0, 0), (0, lq_pad - Lq), (0, lk_pad - Lk)),
                         constant_values=1)
        # Per-(b, iq, ik) "tile has at least one unmasked entry" map (skip empty tiles).
        blocks = mp.reshape(B, n_q, tq_eff, n_kv, tk_eff)
        block_map = jnp.any(blocks == 0, axis=(2, 4)).astype(jnp.int32).reshape(-1)

        q_map = lambda b, iq, ik, bm: (b, iq, 0)
        kv_map = lambda b, iq, ik, bm: (b, ik, 0)
        m_map = lambda b, iq, ik, bm: (b, iq, ik)
        o_map = lambda b, iq, ik, bm: (b, iq, 0)

        inputs = [block_map, qp, kp, vp, mp]
        num_prefetch = 1
        in_specs = [
            pl.BlockSpec((1, tq_eff, D), q_map),
            pl.BlockSpec((1, tk_eff, D), kv_map),
            pl.BlockSpec((1, tk_eff, Dv), kv_map),
            pl.BlockSpec((1, tq_eff, tk_eff), m_map),
        ]
    else:
        q_map = lambda b, iq, ik: (b, iq, 0)
        kv_map = lambda b, iq, ik: (b, ik, 0)
        o_map = lambda b, iq, ik: (b, iq, 0)

        inputs = [qp, kp, vp]
        num_prefetch = 0
        in_specs = [
            pl.BlockSpec((1, tq_eff, D), q_map),
            pl.BlockSpec((1, tk_eff, D), kv_map),
            pl.BlockSpec((1, tk_eff, Dv), kv_map),
        ]

    kernel = functools.partial(
        _sdpa_flash_kernel,
        scale=scale,
        has_mask=has_mask,
        has_kv_pad=has_kv_pad,
        kv_len=Lk,
        tk_blk=tk_eff,
    )

    # VMEM budget: roughly actual usage (double-buffered blocks + scratch + score temporaries)
    # plus headroom — not a blanket 48 MiB (v7x has only 64 MiB per TensorCore).
    isz = jnp.dtype(qp.dtype).itemsize
    vmem_bytes = 2 * isz * (tq_eff * D + tk_eff * D + tk_eff * Dv)     # q/k/v blocks (x2 buf)
    vmem_bytes += 2 * jnp.dtype(out_dtype).itemsize * tq_eff * Dv       # output block (x2 buf)
    if has_mask:
        vmem_bytes += 2 * tq_eff * tk_eff                               # int8 mask block
    vmem_bytes += 4 * tq_eff * (Dv + 2)                                 # acc / m / l scratch
    vmem_bytes += 2 * 4 * tq_eff * tk_eff                               # s / p f32 temporaries
    vmem_limit = int(min(max(vmem_bytes + (4 << 20), 16 << 20), 64 << 20))

    out = pl.pallas_call(
        kernel,
        out_shape=jax.ShapeDtypeStruct((B, lq_pad, Dv), out_dtype),
        grid_spec=pltpu.PrefetchScalarGridSpec(
            num_scalar_prefetch=num_prefetch,
            grid=(B, n_q, n_kv),
            in_specs=in_specs,
            # Same block across the kv axis -> accumulator-resident output.
            out_specs=pl.BlockSpec((1, tq_eff, Dv), o_map),
            scratch_shapes=[
                pltpu.VMEM((tq_eff, 1), jnp.float32),      # running max m
                pltpu.VMEM((tq_eff, 1), jnp.float32),      # running denom l
                pltpu.VMEM((tq_eff, Dv), jnp.float32),     # output accumulator
            ],
        ),
        compiler_params=pltpu.CompilerParams(
            dimension_semantics=("parallel", "parallel", "arbitrary"),
            vmem_limit_bytes=vmem_limit,
        ),
    )(*inputs)

    return out[:, :Lq, :]


def _reference(q, k, v, mask=None):
    s = jnp.einsum("bqd,bkd->bqk", q, k) / math.sqrt(k.shape[-1])
    if mask is not None:
        s = jnp.where(mask, -jnp.inf, s)
    attn = jax.nn.softmax(s, axis=2)
    return jnp.einsum("bqk,bkd->bqd", attn, v)


if __name__ == "__main__":
    key = jax.random.PRNGKey(0)
    kq, kk, kv_, km, kq2, kk2, kv2, km2 = jax.random.split(key, 8)

    # --- small shapes matching the module's toy usage ---
    B, Lq, Lk, D, Dv = 2, 8, 8, 32, 32
    q = jax.random.normal(kq, (B, Lq, D), dtype=jnp.float32)
    k = jax.random.normal(kk, (B, Lk, D), dtype=jnp.float32)
    v = jax.random.normal(kv_, (B, Lk, Dv), dtype=jnp.float32)

    out = jax.block_until_ready(scaled_dot_product_attention(q, k, v))
    ref = _reference(q, k, v)
    assert jnp.allclose(out, ref, atol=2e-3, rtol=2e-3), "unmasked small-shape mismatch"

    mask = jax.random.bernoulli(km, p=0.3, shape=(B, Lq, Lk))
    mask = mask.at[:, :, 0].set(False)  # keep >=1 unmasked key per row (avoid NaN rows)
    out_m = jax.block_until_ready(scaled_dot_product_attention(q, k, v, mask=mask))
    ref_m = _reference(q, k, v, mask=mask)
    assert jnp.allclose(out_m, ref_m, atol=2e-3, rtol=2e-3), "masked small-shape mismatch"

    # --- moderate shapes; explicit small tiles exercise the multi-tile online-softmax,
    #     key-padding, and fully-masked-tile-skip paths ---
    B2, Lq2, Lk2, D2, Dv2 = 2, 256, 320, 64, 96
    q2 = jax.random.normal(kq2, (B2, Lq2, D2), dtype=jnp.float32)
    k2 = jax.random.normal(kk2, (B2, Lk2, D2), dtype=jnp.float32)
    v2 = jax.random.normal(kv2, (B2, Lk2, Dv2), dtype=jnp.float32)
    mask2 = jax.random.bernoulli(km2, p=0.3, shape=(B2, Lq2, Lk2))
    mask2 = mask2.at[:, :, 0].set(False)         # keep >=1 unmasked key per row
    mask2 = mask2.at[:, :, 128:256].set(True)    # one fully-masked kv tile at tk=128 (skip path)

    out2 = jax.block_until_ready(
        scaled_dot_product_attention(q2, k2, v2, tq=128, tk=128))
    ref2 = _reference(q2, k2, v2)
    assert jnp.allclose(out2, ref2, atol=2e-3, rtol=2e-3), "unmasked tiled mismatch"

    out2m = jax.block_until_ready(
        scaled_dot_product_attention(q2, k2, v2, mask=mask2, tq=128, tk=128))
    ref2m = _reference(q2, k2, v2, mask=mask2)
    assert jnp.allclose(out2m, ref2m, atol=2e-3, rtol=2e-3), "masked tiled mismatch"

    # default (large) tile path
    out3 = jax.block_until_ready(scaled_dot_product_attention(q2, k2, v2, mask=mask2))
    assert jnp.allclose(out3, ref2m, atol=2e-3, rtol=2e-3), "masked default-tile mismatch"

    # bf16 MXU path (looser tolerance: bf16 rounding of q/k/v and the PV matmul operands)
    out_bf = jax.block_until_ready(
        scaled_dot_product_attention(q2, k2, v2, mask=mask2, use_bf16=True))
    assert jnp.allclose(out_bf, ref2m, atol=6e-2, rtol=6e-2), "bf16 path mismatch"

    print("KERNEL_OK")
</pallas_src>

<mosaic_0001>
module attributes {stable_mosaic.version = 11 : i64} {
  func.func @_sdpa_flash_kernel(%arg0: i32, %arg1: i32, %arg2: i32, %arg3: memref<1x8x32xf32, #tpu.memory_space<vmem>>, %arg4: memref<1x128x32xf32, #tpu.memory_space<vmem>>, %arg5: memref<1x128x32xf32, #tpu.memory_space<vmem>>, %arg6: memref<1x8x32xf32, #tpu.memory_space<vmem>>, %arg7: memref<8x1xf32, #tpu.memory_space<vmem>>, %arg8: memref<8x1xf32, #tpu.memory_space<vmem>>, %arg9: memref<8x32xf32, #tpu.memory_space<vmem>>) attributes {dimension_semantics = [#tpu.dimension_semantics<parallel>, #tpu.dimension_semantics<parallel>, #tpu.dimension_semantics<arbitrary>], iteration_bounds = array<i64: 2, 1, 1>, scalar_prefetch = 0 : i64, scratch_operands = 3 : i64, tpu.core_type = #tpu.core_type<tc>, window_params = [{transform_indices = @transform_0, window_bounds = array<i64: 1, 8, 32>}, {transform_indices = @transform_1, window_bounds = array<i64: 1, 128, 32>}, {transform_indices = @transform_2, window_bounds = array<i64: 1, 128, 32>}, {transform_indices = @transform_3, window_bounds = array<i64: 1, 8, 32>}]} {
    %c0_i32 = arith.constant 0 : i32
    %0 = arith.cmpi eq, %arg2, %c0_i32 : i32
    %1 = arith.extui %0 : i1 to i32
    %c0_i32_0 = arith.constant 0 : i32
    %2 = arith.cmpi ne, %1, %c0_i32_0 : i32
    scf.if %2 {
      %cst = arith.constant -2.38197633E+38 : f32
      %12 = vector.broadcast %cst : f32 to vector<8x1xf32>
      %c0 = arith.constant 0 : index
      %c0_7 = arith.constant 0 : index
      %13 = vector.load %arg7[%c0, %c0_7] : memref<8x1xf32, #tpu.memory_space<vmem>>, vector<8x1xf32>
      tpu.vector_store %arg7[%c0, %c0_7], %12 {strides = array<i32>} : memref<8x1xf32, #tpu.memory_space<vmem>>, vector<8x1xf32>,
      %cst_8 = arith.constant 0.000000e+00 : f32
      %14 = vector.broadcast %cst_8 : f32 to vector<8x1xf32>
      %c0_9 = arith.constant 0 : index
      %c0_10 = arith.constant 0 : index
      %15 = vector.load %arg8[%c0_9, %c0_10] : memref<8x1xf32, #tpu.memory_space<vmem>>, vector<8x1xf32>
      tpu.vector_store %arg8[%c0_9, %c0_10], %14 {strides = array<i32>} : memref<8x1xf32, #tpu.memory_space<vmem>>, vector<8x1xf32>,
      %cst_11 = arith.constant 0.000000e+00 : f32
      %16 = vector.broadcast %cst_11 : f32 to vector<8x32xf32>
      %c0_12 = arith.constant 0 : index
      %c0_13 = arith.constant 0 : index
      %17 = vector.load %arg9[%c0_12, %c0_13] : memref<8x32xf32, #tpu.memory_space<vmem>>, vector<8x32xf32>
      tpu.vector_store %arg9[%c0_12, %c0_13], %16 {strides = array<i32>} : memref<8x32xf32, #tpu.memory_space<vmem>>, vector<8x32xf32>,
    } else {
    }
    %c0_i32_1 = arith.constant 0 : i32
    %3 = arith.cmpi eq, %arg2, %c0_i32_1 : i32
    %4 = arith.extui %3 : i1 to i32
    %c0_i32_2 = arith.constant 0 : i32
    %5 = arith.cmpi ne, %4, %c0_i32_2 : i32
    scf.if %5 {
      %c0 = arith.constant 0 : index
      %c0_7 = arith.constant 0 : index
      %c0_8 = arith.constant 0 : index
      %12 = vector.load %arg3[%c0, %c0_7, %c0_8] : memref<1x8x32xf32, #tpu.memory_space<vmem>>, vector<1x8x32xf32>
      %13 = vector.shape_cast %12 : vector<1x8x32xf32> to vector<8x32xf32>
      %c0_9 = arith.constant 0 : index
      %c0_10 = arith.constant 0 : index
      %c0_11 = arith.constant 0 : index
      %14 = vector.load %arg4[%c0_9, %c0_10, %c0_11] : memref<1x128x32xf32, #tpu.memory_space<vmem>>, vector<1x128x32xf32>
      %15 = vector.shape_cast %14 : vector<1x128x32xf32> to vector<128x32xf32>
      %c0_12 = arith.constant 0 : index
      %c0_13 = arith.constant 0 : index
      %c0_14 = arith.constant 0 : index
      %16 = vector.load %arg5[%c0_12, %c0_13, %c0_14] : memref<1x128x32xf32, #tpu.memory_space<vmem>>, vector<1x128x32xf32>
      %17 = vector.shape_cast %16 : vector<1x128x32xf32> to vector<128x32xf32>
      %cst = arith.constant 0.176776692 : f32
      %18 = vector.broadcast %cst : f32 to vector<8x32xf32>
      %19 = arith.mulf %13, %18 : vector<8x32xf32>
      %cst_15 = arith.constant dense<0.000000e+00> : vector<8x128xf32>
      %20 = tpu.matmul %19, %15, %cst_15 {dimension_numbers = #tpu.dot_dimension_numbers<[1], [1], [0], [0], [0, 0, 1, 0], [], []>} : vector<8x32xf32>, vector<128x32xf32>, vector<8x128xf32> -> vector<8x128xf32>
      %c128_i32 = arith.constant 128 : i32
      %21 = arith.muli %arg2, %c128_i32 : i32
      %22 = tpu.iota {dimensions = array<i32: 1>} : vector<8x128xi32>
      %23 = vector.broadcast %21 : i32 to vector<8x128xi32>
      %24 = arith.addi %23, %22 : vector<8x128xi32>
      %c8_i32 = arith.constant 8 : i32
      %25 = vector.broadcast %c8_i32 : i32 to vector<8x128xi32>
      %26 = arith.cmpi slt, %24, %25 : vector<8x128xi32>
      %cst_16 = arith.constant -2.38197633E+38 : f32
      %27 = vector.broadcast %cst_16 : f32 to vector<8x128xf32>
      %28 = arith.select %26, %20, %27 : vector<8x128xi1>, vector<8x128xf32>
      %c0_17 = arith.constant 0 : index
      %c0_18 = arith.constant 0 : index
      %29 = vector.load %arg7[%c0_17, %c0_18] : memref<8x1xf32, #tpu.memory_space<vmem>>, vector<8x1xf32>
      %cst_19 = arith.constant dense<0xFF800000> : vector<8xf32>
      %30 = vector.multi_reduction <maximumf>, %28, %cst_19 [1] : vector<8x128xf32> to vector<8xf32>
      %31 = vector.shape_cast %30 : vector<8xf32> to vector<8x1xf32>
      %32 = arith.maximumf %29, %31 : vector<8x1xf32>
      %33 = arith.subf %29, %32 : vector<8x1xf32>
      %34 = math.exp %33 : vector<8x1xf32>
      %35 = vector.broadcast %32 : vector<8x1xf32> to vector<8x128xf32>
      %36 = arith.subf %28, %35 : vector<8x128xf32>
      %37 = math.exp %36 : vector<8x128xf32>
      %c0_20 = arith.constant 0 : index
      %c0_21 = arith.constant 0 : index
      %38 = vector.load %arg8[%c0_20, %c0_21] : memref<8x1xf32, #tpu.memory_space<vmem>>, vector<8x1xf32>
      %39 = arith.mulf %34, %38 : vector<8x1xf32>
      %cst_22 = arith.constant dense<0.000000e+00> : vector<8xf32>
      %40 = vector.multi_reduction <add>, %37, %cst_22 [1] : vector<8x128xf32> to vector<8xf32>
      %41 = vector.shape_cast %40 : vector<8xf32> to vector<8x1xf32>
      %42 = arith.addf %39, %41 : vector<8x1xf32>
      %c0_23 = arith.constant 0 : index
      %c0_24 = arith.constant 0 : index
      %43 = vector.load %arg8[%c0_23, %c0_24] : memref<8x1xf32, #tpu.memory_space<vmem>>, vector<8x1xf32>
      tpu.vector_store %arg8[%c0_23, %c0_24], %42 {strides = array<i32>} : memref<8x1xf32, #tpu.memory_space<vmem>>, vector<8x1xf32>,
      %c0_25 = arith.constant 0 : index
      %c0_26 = arith.constant 0 : index
      %44 = vector.load %arg9[%c0_25, %c0_26] : memref<8x32xf32, #tpu.memory_space<vmem>>, vector<8x32xf32>
      %45 = vector.broadcast %34 : vector<8x1xf32> to vector<8x32xf32>
      %46 = arith.mulf %45, %44 : vector<8x32xf32>
      %cst_27 = arith.constant dense<0.000000e+00> : vector<8x32xf32>
      %47 = tpu.matmul %37, %17, %cst_27 {dimension_numbers = #tpu.dot_dimension_numbers<[1], [0], [0], [1], [0, 0, 1, 1], [], []>} : vector<8x128xf32>, vector<128x32xf32>, vector<8x32xf32> -> vector<8x32xf32>
      %48 = arith.addf %46, %47 : vector<8x32xf32>
      %c0_28 = arith.constant 0 : index
      %c0_29 = arith.constant 0 : index
      %49 = vector.load %arg9[%c0_28, %c0_29] : memref<8x32xf32, #tpu.memory_space<vmem>>, vector<8x32xf32>
      tpu.vector_store %arg9[%c0_28, %c0_29], %48 {strides = array<i32>} : memref<8x32xf32, #tpu.memory_space<vmem>>, vector<8x32xf32>,
      %c0_30 = arith.constant 0 : index
      %c0_31 = arith.constant 0 : index
      %50 = vector.load %arg7[%c0_30, %c0_31] : memref<8x1xf32, #tpu.memory_space<vmem>>, vector<8x1xf32>
      tpu.vector_store %arg7[%c0_30, %c0_31], %32 {strides = array<i32>} : memref<8x1xf32, #tpu.memory_space<vmem>>, vector<8x1xf32>,
    } else {
    }
    %c0_i32_3 = arith.constant 0 : i32
    %6 = arith.cmpi ne, %arg2, %c0_i32_3 : i32
    %7 = arith.extui %6 : i1 to i32
    %c0_i32_4 = arith.constant 0 : i32
    %8 = arith.cmpi ne, %7, %c0_i32_4 : i32
    scf.if %8 {
      %c0 = arith.constant 0 : index
      %c0_7 = arith.constant 0 : index
      %c0_8 = arith.constant 0 : index
      %12 = vector.load %arg3[%c0, %c0_7, %c0_8] : memref<1x8x32xf32, #tpu.memory_space<vmem>>, vector<1x8x32xf32>
      %13 = vector.shape_cast %12 : vector<1x8x32xf32> to vector<8x32xf32>
      %c0_9 = arith.constant 0 : index
      %c0_10 = arith.constant 0 : index
      %c0_11 = arith.constant 0 : index
      %14 = vector.load %arg4[%c0_9, %c0_10, %c0_11] : memref<1x128x32xf32, #tpu.memory_space<vmem>>, vector<1x128x32xf32>
      %15 = vector.shape_cast %14 : vector<1x128x32xf32> to vector<128x32xf32>
      %c0_12 = arith.constant 0 : index
      %c0_13 = arith.constant 0 : index
      %c0_14 = arith.constant 0 : index
      %16 = vector.load %arg5[%c0_12, %c0_13, %c0_14] : memref<1x128x32xf32, #tpu.memory_space<vmem>>, vector<1x128x32xf32>
      %17 = vector.shape_cast %16 : vector<1x128x32xf32> to vector<128x32xf32>
      %cst = arith.constant 0.176776692 : f32
      %18 = vector.broadcast %cst : f32 to vector<8x32xf32>
      %19 = arith.mulf %13, %18 : vector<8x32xf32>
      %cst_15 = arith.constant dense<0.000000e+00> : vector<8x128xf32>
      %20 = tpu.matmul %19, %15, %cst_15 {dimension_numbers = #tpu.dot_dimension_numbers<[1], [1], [0], [0], [0, 0, 1, 0], [], []>} : vector<8x32xf32>, vector<128x32xf32>, vector<8x128xf32> -> vector<8x128xf32>
      %c0_16 = arith.constant 0 : index
      %c0_17 = arith.constant 0 : index
      %21 = vector.load %arg7[%c0_16, %c0_17] : memref<8x1xf32, #tpu.memory_space<vmem>>, vector<8x1xf32>
      %cst_18 = arith.constant dense<0xFF800000> : vector<8xf32>
      %22 = vector.multi_reduction <maximumf>, %20, %cst_18 [1] : vector<8x128xf32> to vector<8xf32>
      %23 = vector.shape_cast %22 : vector<8xf32> to vector<8x1xf32>
      %24 = arith.maximumf %21, %23 : vector<8x1xf32>
      %25 = arith.subf %21, %24 : vector<8x1xf32>
      %26 = math.exp %25 : vector<8x1xf32>
      %27 = vector.broadcast %24 : vector<8x1xf32> to vector<8x128xf32>
      %28 = arith.subf %20, %27 : vector<8x128xf32>
      %29 = math.exp %28 : vector<8x128xf32>
      %c0_19 = arith.constant 0 : index
      %c0_20 = arith.constant 0 : index
      %30 = vector.load %arg8[%c0_19, %c0_20] : memref<8x1xf32, #tpu.memory_space<vmem>>, vector<8x1xf32>
      %31 = arith.mulf %26, %30 : vector<8x1xf32>
      %cst_21 = arith.constant dense<0.000000e+00> : vector<8xf32>
      %32 = vector.multi_reduction <add>, %29, %cst_21 [1] : vector<8x128xf32> to vector<8xf32>
      %33 = vector.shape_cast %32 : vector<8xf32> to vector<8x1xf32>
      %34 = arith.addf %31, %33 : vector<8x1xf32>
      %c0_22 = arith.constant 0 : index
      %c0_23 = arith.constant 0 : index
      %35 = vector.load %arg8[%c0_22, %c0_23] : memref<8x1xf32, #tpu.memory_space<vmem>>, vector<8x1xf32>
      tpu.vector_store %arg8[%c0_22, %c0_23], %34 {strides = array<i32>} : memref<8x1xf32, #tpu.memory_space<vmem>>, vector<8x1xf32>,
      %c0_24 = arith.constant 0 : index
      %c0_25 = arith.constant 0 : index
      %36 = vector.load %arg9[%c0_24, %c0_25] : memref<8x32xf32, #tpu.memory_space<vmem>>, vector<8x32xf32>
      %37 = vector.broadcast %26 : vector<8x1xf32> to vector<8x32xf32>
      %38 = arith.mulf %37, %36 : vector<8x32xf32>
      %cst_26 = arith.constant dense<0.000000e+00> : vector<8x32xf32>
      %39 = tpu.matmul %29, %17, %cst_26 {dimension_numbers = #tpu.dot_dimension_numbers<[1], [0], [0], [1], [0, 0, 1, 1], [], []>} : vector<8x128xf32>, vector<128x32xf32>, vector<8x32xf32> -> vector<8x32xf32>
      %40 = arith.addf %38, %39 : vector<8x32xf32>
      %c0_27 = arith.constant 0 : index
      %c0_28 = arith.constant 0 : index
      %41 = vector.load %arg9[%c0_27, %c0_28] : memref<8x32xf32, #tpu.memory_space<vmem>>, vector<8x32xf32>
      tpu.vector_store %arg9[%c0_27, %c0_28], %40 {strides = array<i32>} : memref<8x32xf32, #tpu.memory_space<vmem>>, vector<8x32xf32>,
      %c0_29 = arith.constant 0 : index
      %c0_30 = arith.constant 0 : index
      %42 = vector.load %arg7[%c0_29, %c0_30] : memref<8x1xf32, #tpu.memory_space<vmem>>, vector<8x1xf32>
      tpu.vector_store %arg7[%c0_29, %c0_30], %24 {strides = array<i32>} : memref<8x1xf32, #tpu.memory_space<vmem>>, vector<8x1xf32>,
    } else {
    }
    %c0_i32_5 = arith.constant 0 : i32
    %9 = arith.cmpi eq, %arg2, %c0_i32_5 : i32
    %10 = arith.extui %9 : i1 to i32
    %c0_i32_6 = arith.constant 0 : i32
    %11 = arith.cmpi ne, %10, %c0_i32_6 : i32
    scf.if %11 {
      %c0 = arith.constant 0 : index
      %c0_7 = arith.constant 0 : index
      %12 = vector.load %arg8[%c0, %c0_7] : memref<8x1xf32, #tpu.memory_space<vmem>>, vector<8x1xf32>
      %13 = tpu.reciprocal %12 {approx = true} : vector<8x1xf32> -> vector<8x1xf32>
      %c0_8 = arith.constant 0 : index
      %c0_9 = arith.constant 0 : index
      %14 = vector.load %arg9[%c0_8, %c0_9] : memref<8x32xf32, #tpu.memory_space<vmem>>, vector<8x32xf32>
      %15 = vector.broadcast %13 : vector<8x1xf32> to vector<8x32xf32>
      %16 = arith.mulf %14, %15 : vector<8x32xf32>
      %c0_10 = arith.constant 0 : index
      %c0_11 = arith.constant 0 : index
      %c0_12 = arith.constant 0 : index
      %17 = vector.load %arg6[%c0_10, %c0_11, %c0_12] : memref<1x8x32xf32, #tpu.memory_space<vmem>>, vector<1x8x32xf32>
      %18 = vector.shape_cast %17 : vector<1x8x32xf32> to vector<8x32xf32>
      %19 = vector.shape_cast %16 : vector<8x32xf32> to vector<1x8x32xf32>
      tpu.vector_store %arg6[%c0_10, %c0_11, %c0_12], %19 {strides = array<i32>} : memref<1x8x32xf32, #tpu.memory_space<vmem>>, vector<1x8x32xf32>,
    } else {
    }
    return
  }
  func.func @transform_0(%arg0: i32, %arg1: i32, %arg2: i32) -> (i32, i32, i32) {
    %c0_i32 = arith.constant 0 : i32
    %c0_i32_0 = arith.constant 0 : i32
    return %arg0, %arg1, %c0_i32 : i32, i32, i32
  }
  func.func @transform_1(%arg0: i32, %arg1: i32, %arg2: i32) -> (i32, i32, i32) {
    %c0_i32 = arith.constant 0 : i32
    %c0_i32_0 = arith.constant 0 : i32
    return %arg0, %arg2, %c0_i32 : i32, i32, i32
  }
  func.func @transform_2(%arg0: i32, %arg1: i32, %arg2: i32) -> (i32, i32, i32) {
    %c0_i32 = arith.constant 0 : i32
    %c0_i32_0 = arith.constant 0 : i32
    return %arg0, %arg2, %c0_i32 : i32, i32, i32
  }
  func.func @transform_3(%arg0: i32, %arg1: i32, %arg2: i32) -> (i32, i32, i32) {
    %c0_i32 = arith.constant 0 : i32
    %c0_i32_0 = arith.constant 0 : i32
    return %arg0, %arg1, %c0_i32 : i32, i32, i32
  }
}

</mosaic_0001>

<llo_original>
// kernel: tpu_custom_call.1
$region0: #{tpu_custom_call.1}
  #allocation0 [shape = 'u32[]', space=smem, size = 0x4, offset = 0x4, fixed_abs, tag = 'smem constant byte address 0x4 - core index']
  #allocation1 [shape = 'u32[72,128]{1,0:T(1,128)}', space=vmem, size = 0x9000, scoped, tag = 'internal scratch']
  #allocation2 [shape = 'f32[8,1]{1,0:T(8,128)}', space=vmem, size = 0x1000, scoped, tag = 'scratch operand']
  #allocation3 [shape = 'f32[8,1]{1,0:T(8,128)}', space=vmem, size = 0x1000, scoped, tag = 'scratch operand']
  #allocation4 [shape = 'f32[8,32]{1,0:T(8,128)}', space=vmem, size = 0x1000, scoped, tag = 'scratch operand']
  %s0 = inlined_call_operand.vmem [shape: f32[2,8,32], index: 0, kind: input, shape index: {}]
  %s1 = inlined_call_operand.vmem [shape: f32[2,128,32], index: 1, kind: input, shape index: {}]
  %s2 = inlined_call_operand.vmem [shape: f32[2,128,32], index: 2, kind: input, shape index: {}]
  %s3 = inlined_call_operand.hbm [shape: f32[2,8,32], index: 3, kind: output, shape index: {}]
  %s4 = sld [smem:[#allocation0]]
  $region57: #{tpu_custom_call.1} parent=0
    _
  %s6 = ssub.s32 1, %s4
  %s7 = scalar_select 0, %s6, %s4
  $region1: #{tpu_custom_call.1} parent=0
    #allocation5 [shape = 'u8[8192]{0}', space=vmem, size = 0x2000, scoped, tag = 'output window, operand 0']
    #allocation6 [shape = 's32[2]{0}', space=sflag, size = 0x8, scoped, tag = 'scoped memory for tpu_custom_call.1']
    %8 = vsyncpa [#allocation6], 0
    %s9 = scalar_lea.sflag [#allocation6], 1
    %10 = vsyncpa %s9, 0
    loop: start=0, step=1, limit=4
    $region2: #{tpu_custom_call.1} parent=1 // loop_pre_header
      _
    $region3: #{tpu_custom_call.1} parent=1 // loop_header
      %s12 = sphi 0, %s16
      %p13 = scmp.ge.s32.totalorder %s12, 4
      %s19 = sphi 0, %s38
      %s20 = sphi 0, %s34
      %s21 = sphi 0, %s30
      %s22 = sphi 0, %s19
      %s23 = sphi 0, %s20
      %s24 = sphi 0, %s21
      %s25 = sphi 0, %s22
      %s26 = sphi 0, %s23
      %s27 = sphi 0, %s24
      %s43 = sphi 0, %s45
      %s46 = sphi 0, %s43
      %s47 = sphi 0, %s46
      %s63 = sphi 0, %s47
      %s71 = sphi 0, %s73
      %s74 = sphi 0, %s71
      %s75 = sphi 0, %s74
      %s91 = sphi 0, %s75
      %s99 = sphi 0, %s101
      %s102 = sphi 0, %s99
      %s103 = sphi 0, %s102
      %s119 = sphi 0, %s103
      %s127 = sphi 0, %s129
      %s130 = sphi 0, %s127
      %s131 = sphi 0, %s130
      %s147 = sphi 0, %s131
    $region4: #{tpu_custom_call.1} parent=1 // loop_header_branch
      %15 = sbr.rel (%p13) target = $region8
    $region5: #{tpu_custom_call.1} parent=1 // loop_body
      %s17 = ssub.s32 %s12, 1
      %s18 = ssub.s32 %s12, 2
      %s28 = sadd.s32 1, %s21
      %p29 = scmp.ge.s32.totalorder %s28, 1
      %s30 = scalar_select %p29, 0, %s28
      %s31 = sadd.s32 1, %s20
      %s32 = scalar_select %p29, %s31, %s20
      %p33 = scmp.ge.s32.totalorder %s32, 1
      %s34 = scalar_select %p33, 0, %s32
      %s35 = sadd.s32 1, %s19
      %s36 = scalar_select %p33, %s35, %s19
      %p37 = scmp.ge.s32.totalorder %s36, 2
      %s38 = scalar_select %p37, 0, %s36
      %s39 = ssub.s32 %s19, %s38
      %s40 = ssub.s32 %s20, %s34
      %s41 = sor.u32 %s39, %s40
      %p42 = scmp.eq.s32.totalorder %s41, 0
      %s44 = sadd.s32 %s43, 1
      %s45 = scalar_select %p42, %s43, %s44
      %p48 = pneg %p42
      %p49 = scmp.eq.s32.totalorder %s12, 1
      %p50 = por %p48, %p49
      %p51 = scmp.ne.s32.totalorder %s43, %s46
      %p52 = scmp.eq.s32.totalorder %s12, 0
      %p53 = por %p51, %p52
      %p54 = scmp.ne.s32.totalorder %s43, %s46
      %p55 = scmp.eq.s32.totalorder %s17, 1
      %p56 = por %p54, %p55
      %p57 = scmp.ne.s32.totalorder %s46, %s47
      %p58 = scmp.eq.s32.totalorder %s17, 0
      %p59 = por %p57, %p58
      %p60 = scmp.ne.s32.totalorder %s46, %s47
      %p61 = scmp.eq.s32.totalorder %s18, 1
      %p62 = por %p60, %p61
      %p64 = scmp.ne.s32.totalorder %s47, %s63
      %p65 = scmp.eq.s32.totalorder %s18, 0
      %p66 = por %p64, %p65
      %s67 = ssub.s32 %s19, %s38
      %s68 = ssub.s32 %s21, %s30
      %s69 = sor.u32 %s67, %s68
      %p70 = scmp.eq.s32.totalorder %s69, 0
      %s72 = sadd.s32 %s71, 1
      %s73 = scalar_select %p70, %s71, %s72
      %p76 = pneg %p70
      %p77 = scmp.eq.s32.totalorder %s12, 1
      %p78 = por %p76, %p77
      %p79 = scmp.ne.s32.totalorder %s71, %s74
      %p80 = scmp.eq.s32.totalorder %s12, 0
      %p81 = por %p79, %p80
      %p82 = scmp.ne.s32.totalorder %s71, %s74
      %p83 = scmp.eq.s32.totalorder %s17, 1
      %p84 = por %p82, %p83
      %p85 = scmp.ne.s32.totalorder %s74, %s75
      %p86 = scmp.eq.s32.totalorder %s17, 0
      %p87 = por %p85, %p86
      %p88 = scmp.ne.s32.totalorder %s74, %s75
      %p89 = scmp.eq.s32.totalorder %s18, 1
      %p90 = por %p88, %p89
      %p92 = scmp.ne.s32.totalorder %s75, %s91
      %p93 = scmp.eq.s32.totalorder %s18, 0
      %p94 = por %p92, %p93
      %s95 = ssub.s32 %s19, %s38
      %s96 = ssub.s32 %s21, %s30
      %s97 = sor.u32 %s95, %s96
      %p98 = scmp.eq.s32.totalorder %s97, 0
      %s100 = sadd.s32 %s99, 1
      %s101 = scalar_select %p98, %s99, %s100
      %p104 = pneg %p98
      %p105 = scmp.eq.s32.totalorder %s12, 1
      %p106 = por %p104, %p105
      %p107 = scmp.ne.s32.totalorder %s99, %s102
      %p108 = scmp.eq.s32.totalorder %s12, 0
      %p109 = por %p107, %p108
      %p110 = scmp.ne.s32.totalorder %s99, %s102
      %p111 = scmp.eq.s32.totalorder %s17, 1
      %p112 = por %p110, %p111
      %p113 = scmp.ne.s32.totalorder %s102, %s103
      %p114 = scmp.eq.s32.totalorder %s17, 0
      %p115 = por %p113, %p114
      %p116 = scmp.ne.s32.totalorder %s102, %s103
      %p117 = scmp.eq.s32.totalorder %s18, 1
      %p118 = por %p116, %p117
      %p120 = scmp.ne.s32.totalorder %s103, %s119
      %p121 = scmp.eq.s32.totalorder %s18, 0
      %p122 = por %p120, %p121
      %s123 = ssub.s32 %s19, %s38
      %s124 = ssub.s32 %s20, %s34
      %s125 = sor.u32 %s123, %s124
      %p126 = scmp.eq.s32.totalorder %s125, 0
      %s128 = sadd.s32 %s127, 1
      %s129 = scalar_select %p126, %s127, %s128
      %p132 = pneg %p126
      %p133 = scmp.eq.s32.totalorder %s12, 1
      %p134 = por %p132, %p133
      %p135 = scmp.ne.s32.totalorder %s127, %s130
      %p136 = scmp.eq.s32.totalorder %s12, 0
      %p137 = por %p135, %p136
      %p138 = scmp.ne.s32.totalorder %s127, %s130
      %p139 = scmp.eq.s32.totalorder %s17, 1
      %p140 = por %p138, %p139
      %p141 = scmp.ne.s32.totalorder %s130, %s131
      %p142 = scmp.eq.s32.totalorder %s17, 0
      %p143 = por %p141, %p142
      %p144 = scmp.ne.s32.totalorder %s130, %s131
      %p145 = scmp.eq.s32.totalorder %s18, 1
      %p146 = por %p144, %p145
      %p148 = scmp.ne.s32.totalorder %s131, %s147
      %p149 = scmp.eq.s32.totalorder %s18, 0
      %p150 = por %p148, %p149
      %p151 = scmp.le.s32.totalorder 1, %s12
      %p152 = scmp.lt.s32.totalorder %s12, 3
      %p153 = pnand %p151, %p152
      %p154 = pneg %p153
      // Predicated region
      $region9: #{tpu_custom_call.1} parent=5 // pred_check
        _
      $region10: #{tpu_custom_call.1} parent=5 // pred_check_branch
        %156 = sbr.rel (%p153) target = $region12
      $region11: #{tpu_custom_call.1} parent=5 // pred_region
        %s157 = ssub.s32 %s12, 1
      $region12: #{tpu_custom_call.1} parent=5 // pred_fallthru
        _
      %p158 = scmp.lt.s32.totalorder %s12, 2
      // Predicated region
      $region13: #{tpu_custom_call.1} parent=5 // pred_check
        %p159 = pneg %p158
      $region14: #{tpu_custom_call.1} parent=5 // pred_check_branch
        %161 = sbr.rel (%p159) target = $region16
      $region15: #{tpu_custom_call.1} parent=5 // pred_region
        // Predicated region
        $region17: #{tpu_custom_call.1} parent=15 // pred_check
          %p162 = pneg %p53
        $region18: #{tpu_custom_call.1} parent=15 // pred_check_branch
          %164 = sbr.rel (%p162) target = $region20
        $region19: #{tpu_custom_call.1} parent=15 // pred_region
          %p165 = scmp.lt.s32.totalorder %s19, 1
          %s166 = scalar_select %p165, %s19, 1
          %p167 = scmp.lt.s32.totalorder %s20, 0
          %s168 = scalar_select %p167, %s20, 0
          %s169 = sadd.s32 %s168, %s166
          %s170 = smul.addr %s169, 8
          %s171 = scalar_lea.vmem %s0, %s170
        $region20: #{tpu_custom_call.1} parent=15 // pred_fallthru
          _
        // Predicated region
        $region21: #{tpu_custom_call.1} parent=15 // pred_check
          %p172 = pneg %p81
        $region22: #{tpu_custom_call.1} parent=15 // pred_check_branch
          %174 = sbr.rel (%p172) target = $region24
        $region23: #{tpu_custom_call.1} parent=15 // pred_region
          %s175 = smul.u32 16, %s21
          %p176 = scmp.lt.s32.totalorder %s19, 1
          %s177 = scalar_select %p176, %s19, 1
          %p178 = scmp.lt.s32.totalorder %s175, 15
          %s179 = scalar_select %p178, %s175, 15
          %s180 = smul.addr %s177, 16
          %s181 = sadd.s32 %s179, %s180
          %s182 = smul.addr %s181, 8
          %s183 = scalar_lea.vmem %s1, %s182
          %s184 = smul.u32 16, %s21
        $region24: #{tpu_custom_call.1} parent=15 // pred_fallthru
          _
        // Predicated region
        $region25: #{tpu_custom_call.1} parent=15 // pred_check
          %p185 = pneg %p109
        $region26: #{tpu_custom_call.1} parent=15 // pred_check_branch
          %187 = sbr.rel (%p185) target = $region28
        $region27: #{tpu_custom_call.1} parent=15 // pred_region
          %s188 = smul.u32 16, %s21
          %p189 = scmp.lt.s32.totalorder %s19, 1
          %s190 = scalar_select %p189, %s19, 1
          %p191 = scmp.lt.s32.totalorder %s188, 15
          %s192 = scalar_select %p191, %s188, 15
          %s193 = smul.addr %s190, 16
          %s194 = sadd.s32 %s192, %s193
          %s195 = smul.addr %s194, 8
          %s196 = scalar_lea.vmem %s2, %s195
          %s197 = smul.u32 16, %s21
        $region28: #{tpu_custom_call.1} parent=15 // pred_fallthru
          _
      $region16: #{tpu_custom_call.1} parent=5 // pred_fallthru
        _
      %p198 = scmp.le.s32.totalorder 1, %s12
      %p199 = scmp.lt.s32.totalorder %s12, 3
      %p200 = pnand %p198, %p199
      %p201 = pneg %p200
      // Predicated region
      $region29: #{tpu_custom_call.1} parent=5 // pred_check
        _
      $region30: #{tpu_custom_call.1} parent=5 // pred_check_branch
        %203 = sbr.rel (%p200) target = $region32
      $region31: #{tpu_custom_call.1} parent=5 // pred_region
        %s204 = ssub.s32 %s12, 1
        %p205 = scmp.lt.s32.totalorder %s22, 1
        %s206 = scalar_select %p205, %s22, 1
        %p207 = scmp.lt.s32.totalorder %s23, 0
        %s208 = scalar_select %p207, %s23, 0
        %s209 = sadd.s32 %s208, %s206
        %s210 = smul.addr %s209, 8
        %s211 = scalar_lea.vmem %s0, %s210
        %p212 = pneg %p59
        %p213 = pneg %p56
        %s214 = smul.u32 16, %s24
        %p215 = scmp.lt.s32.totalorder %s22, 1
        %s216 = scalar_select %p215, %s22, 1
        %p217 = scmp.lt.s32.totalorder %s214, 15
        %s218 = scalar_select %p217, %s214, 15
        %s219 = smul.addr %s216, 16
        %s220 = sadd.s32 %s218, %s219
        %s221 = smul.addr %s220, 8
        %s222 = scalar_lea.vmem %s1, %s221
        %p223 = pneg %p87
        %p224 = pneg %p84
        %s225 = smul.u32 16, %s24
        %p226 = scmp.lt.s32.totalorder %s22, 1
        %s227 = scalar_select %p226, %s22, 1
        %p228 = scmp.lt.s32.totalorder %s225, 15
        %s229 = scalar_select %p228, %s225, 15
        %s230 = smul.addr %s227, 16
        %s231 = sadd.s32 %s229, %s230
        %s232 = smul.addr %s231, 8
        %s233 = scalar_lea.vmem %s2, %s232
        %p234 = pneg %p115
        %p235 = pneg %p112
        %p236 = pneg %p143
        %p237 = pneg %p140
        %s238 = sand.u32 %s130, 1
        %s239 = scalar_lea.sflag [#allocation6], %s238
        %s240 = sand.u32 %s130, 1
        %s241 = smul.addr %s240, 8
        %s242 = scalar_lea.vmem [#allocation5], %s241
        %p243 = scmp.lt.s32.totalorder %s22, 1
        %s244 = scalar_select %p243, %s22, 1
        %p245 = scmp.lt.s32.totalorder %s23, 0
        %s246 = scalar_select %p245, %s23, 0
        %s247 = sadd.s32 %s246, %s244
        %s248 = smul.addr %s247, 8
        %s249 = scalar_lea.vmem %s0, %s248
        %s250 = smul.u32 16, %s24
        %p251 = scmp.lt.s32.totalorder %s22, 1
        %s252 = scalar_select %p251, %s22, 1
        %p253 = scmp.lt.s32.totalorder %s250, 15
        %s254 = scalar_select %p253, %s250, 15
        %s255 = smul.addr %s252, 16
        %s256 = sadd.s32 %s254, %s255
        %s257 = smul.addr %s256, 8
        %s258 = scalar_lea.vmem %s1, %s257
        %s259 = smul.u32 16, %s24
        %s260 = smul.u32 16, %s24
        %p261 = scmp.lt.s32.totalorder %s22, 1
        %s262 = scalar_select %p261, %s22, 1
        %p263 = scmp.lt.s32.totalorder %s260, 15
        %s264 = scalar_select %p263, %s260, 15
        %s265 = smul.addr %s262, 16
        %s266 = sadd.s32 %s264, %s265
        %s267 = smul.addr %s266, 8
        %s268 = scalar_lea.vmem %s2, %s267
        %s269 = smul.u32 16, %s24
        %p270 = scmp.eq.s32.totalorder %s24, 0
        // Predicated region
        $region33: #{tpu_custom_call.1} parent=31 // pred_check
          %p271 = pneg %p270
        $region34: #{tpu_custom_call.1} parent=31 // pred_check_branch
          %273 = sbr.rel (%p271) target = $region36
        $region35: #{tpu_custom_call.1} parent=31 // pred_region
          %vm274 = vcmask 7168
          %275 = vst.msk [vmem:[#allocation2] sm:$0xff] %vm274, -2.3819763e+38
          %276 = vst.msk [vmem:[#allocation3] sm:$0xff] %vm274, 0.0
          %vm277 = vcmask 261120
          %278 = vst.msk [vmem:[#allocation4] sm:$0xff] %vm277, 0.0
          %v279 = vld [vmem:[%s249] sm:$0xff]
          %v280 = vld [vmem:[%s258] sm:$0xff]
          %v281 = vld [vmem:[%s258 + $0x8] sm:$0xff]
          %v282 = vld [vmem:[%s258 + $0x10] sm:$0xff]
          %v283 = vld [vmem:[%s258 + $0x18] sm:$0xff]
          %v284 = vld [vmem:[%s258 + $0x20] sm:$0xff]
          %v285 = vld [vmem:[%s258 + $0x28] sm:$0xff]
          %v286 = vld [vmem:[%s258 + $0x30] sm:$0xff]
          %v287 = vld [vmem:[%s258 + $0x38] sm:$0xff]
          %v288 = vld [vmem:[%s258 + $0x40] sm:$0xff]
          %v289 = vld [vmem:[%s258 + $0x48] sm:$0xff]
          %v290 = vld [vmem:[%s258 + $0x50] sm:$0xff]
          %v291 = vld [vmem:[%s258 + $0x58] sm:$0xff]
          %v292 = vld [vmem:[%s258 + $0x60] sm:$0xff]
          %v293 = vld [vmem:[%s258 + $0x68] sm:$0xff]
          %v294 = vld [vmem:[%s258 + $0x70] sm:$0xff]
          %v295 = vld [vmem:[%s258 + $0x78] sm:$0xff]
          %v296 = vld [vmem:[%s268] sm:$0xff]
          %v297 = vld [vmem:[%s268 + $0x8] sm:$0xff]
          %v298 = vld [vmem:[%s268 + $0x10] sm:$0xff]
          %v299 = vld [vmem:[%s268 + $0x18] sm:$0xff]
          %v300 = vld [vmem:[%s268 + $0x20] sm:$0xff]
          %v301 = vld [vmem:[%s268 + $0x28] sm:$0xff]
          %v302 = vld [vmem:[%s268 + $0x30] sm:$0xff]
          %v303 = vld [vmem:[%s268 + $0x38] sm:$0xff]
          %v304 = vld [vmem:[%s268 + $0x40] sm:$0xff]
          %v305 = vld [vmem:[%s268 + $0x48] sm:$0xff]
          %v306 = vld [vmem:[%s268 + $0x50] sm:$0xff]
          %v307 = vld [vmem:[%s268 + $0x58] sm:$0xff]
          %v308 = vld [vmem:[%s268 + $0x60] sm:$0xff]
          %v309 = vld [vmem:[%s268 + $0x68] sm:$0xff]
          %v310 = vld [vmem:[%s268 + $0x70] sm:$0xff]
          %v311 = vld [vmem:[%s268 + $0x78] sm:$0xff]
          %v312 = vmul.f32 %v279, 0.17677669
          %v314 = vsel %vm277, %v312, 0
          %v317 = vsel %vm277, %v280, 0
          %v320 = vsel %vm277, %v281, 0
          %v323 = vsel %vm277, %v282, 0
          %v326 = vsel %vm277, %v283, 0
          %v329 = vsel %vm277, %v284, 0
          %v332 = vsel %vm277, %v285, 0
          %v335 = vsel %vm277, %v286, 0
          %v338 = vsel %vm277, %v287, 0
          %v341 = vsel %vm277, %v288, 0
          %v344 = vsel %vm277, %v289, 0
          %v347 = vsel %vm277, %v290, 0
          %v350 = vsel %vm277, %v291, 0
          %v353 = vsel %vm277, %v292, 0
          %v356 = vsel %vm277, %v293, 0
          %v359 = vsel %vm277, %v294, 0
          %v362 = vsel %vm277, %v295, 0
          %364 = vmatpush.xpose.msra.mxu0 %v362
          %365 = vmatpush.xpose.msra.mxu0 %v359
          %366 = vmatpush.xpose.msra.mxu0 %v356
          %367 = vmatpush.xpose.msra.mxu0 %v353
          %368 = vmatpush.xpose.msra.mxu0 %v350
          %369 = vmatpush.xpose.msra.mxu0 %v347
          %370 = vmatpush.xpose.msra.mxu0 %v344
          %371 = vmatpush.xpose.msra.mxu0 %v341
          %372 = vmatpush.xpose.msra.mxu0 %v338
          %373 = vmatpush.xpose.msra.mxu0 %v335
          %374 = vmatpush.xpose.msra.mxu0 %v332
          %375 = vmatpush.xpose.msra.mxu0 %v329
          %376 = vmatpush.xpose.msra.mxu0 %v326
          %377 = vmatpush.xpose.msra.mxu0 %v323
          %378 = vmatpush.xpose.msra.mxu0 %v320
          %379 = vmatpush.xpose.msra.mxu0 %v317
          %380 = vmatmul.f32.gmra.mxu0 %v314
          %v381 = vpop.f32.mrf.mxu0
          %v382 = vadd.f32 0.0, %v381
          %383 = vdwg.mxu0
          %s384 = smul.u32 %s24, 128
          %v385 = vlaneseq
          %v386 = vand.u32 %v385, 127
          %v387 = vstv %s384
          %v388 = vadd.s32 %v387, %v386
          %vm389 = vcmp.lt.s32.totalorder %v388, 8
          %v390 = vsel %vm389, %v382, -2.3819763e+38
          %v391 = vld [vmem:[#allocation2] sm:$0xff]
          %392 = vmax.xlane.f32.xlu0 %v390
          %v393 = vpop.xlane.xlu0 %392
          %v394 = vmax.f32 %v391, %v393
          %v395 = vsub.f32 %v391, %v394
          %v396 = vmul.f32 %v395, 1.442695
          %v397 = vpow.pop %v396
          %399 = vset.pattern.permute.xlu0 0
          %400 = vperm.xlu0 %399, %v394
          %v401 = vpop.permute.xlu0 %400
          %v403 = vsub.f32 %v390, %v401
          %v404 = vmul.f32 %v403, 1.442695
          %v405 = vpow.pop %v404
          %v406 = vld [vmem:[#allocation3] sm:$0xff]
          %v407 = vmul.f32 %v397, %v406
          %408 = vadd.xlane.f32.xlu0 %v405
          %v409 = vpop.xlane.xlu0 %408
          %v410 = vadd.f32 %v407, %v409
          %411 = vst.msk [vmem:[#allocation3] sm:$0xff] %vm274, %v410
          %v412 = vld [vmem:[#allocation4] sm:$0xff]
          %414 = vset.pattern.permute.xlu0 0
          %415 = vperm.xlu0 %414, %v397
          %v416 = vpop.permute.xlu0 %415
          %v418 = vmul.f32 %v416, %v412
          %419 = vmatpush.msra.mxu0 %v311
          %420 = vmatpush.msra.mxu0 %v310
          %421 = vmatpush.msra.mxu0 %v309
          %422 = vmatpush.msra.mxu0 %v308
          %423 = vmatpush.msra.mxu0 %v307
          %424 = vmatpush.msra.mxu0 %v306
          %425 = vmatpush.msra.mxu0 %v305
          %426 = vmatpush.msra.mxu0 %v304
          %427 = vmatpush.msra.mxu0 %v303
          %428 = vmatpush.msra.mxu0 %v302
          %429 = vmatpush.msra.mxu0 %v301
          %430 = vmatpush.msra.mxu0 %v300
          %431 = vmatpush.msra.mxu0 %v299
          %432 = vmatpush.msra.mxu0 %v298
          %433 = vmatpush.msra.mxu0 %v297
          %434 = vmatpush.msra.mxu0 %v296
          %435 = vmatmul.f32.gmra.mxu0 %v405
          %v436 = vpop.f32.mrf.mxu0
          %v437 = vadd.f32 0.0, %v436
          %438 = vdwg.mxu0
          %v439 = vadd.f32 %v418, %v437
          %440 = vst.msk [vmem:[#allocation4] sm:$0xff] %vm277, %v439
          %441 = vst.msk [vmem:[#allocation2] sm:$0xff] %vm274, %v394
        $region36: #{tpu_custom_call.1} parent=31 // pred_fallthru
          _
        %p442 = scmp.ne.s32.totalorder %s24, 0
        // Predicated region
        $region37: #{tpu_custom_call.1} parent=31 // pred_check
          %p443 = pneg %p442
        $region38: #{tpu_custom_call.1} parent=31 // pred_check_branch
          %445 = sbr.rel (%p443) target = $region40
        $region39: #{tpu_custom_call.1} parent=31 // pred_region
          %v446 = vld [vmem:[%s249] sm:$0xff]
          %v447 = vld [vmem:[%s258] sm:$0xff]
          %v448 = vld [vmem:[%s258 + $0x8] sm:$0xff]
          %v449 = vld [vmem:[%s258 + $0x10] sm:$0xff]
          %v450 = vld [vmem:[%s258 + $0x18] sm:$0xff]
          %v451 = vld [vmem:[%s258 + $0x20] sm:$0xff]
          %v452 = vld [vmem:[%s258 + $0x28] sm:$0xff]
          %v453 = vld [vmem:[%s258 + $0x30] sm:$0xff]
          %v454 = vld [vmem:[%s258 + $0x38] sm:$0xff]
          %v455 = vld [vmem:[%s258 + $0x40] sm:$0xff]
          %v456 = vld [vmem:[%s258 + $0x48] sm:$0xff]
          %v457 = vld [vmem:[%s258 + $0x50] sm:$0xff]
          %v458 = vld [vmem:[%s258 + $0x58] sm:$0xff]
          %v459 = vld [vmem:[%s258 + $0x60] sm:$0xff]
          %v460 = vld [vmem:[%s258 + $0x68] sm:$0xff]
          %v461 = vld [vmem:[%s258 + $0x70] sm:$0xff]
          %v462 = vld [vmem:[%s258 + $0x78] sm:$0xff]
          %v463 = vld [vmem:[%s268] sm:$0xff]
          %v464 = vld [vmem:[%s268 + $0x8] sm:$0xff]
          %v465 = vld [vmem:[%s268 + $0x10] sm:$0xff]
          %v466 = vld [vmem:[%s268 + $0x18] sm:$0xff]
          %v467 = vld [vmem:[%s268 + $0x20] sm:$0xff]
          %v468 = vld [vmem:[%s268 + $0x28] sm:$0xff]
          %v469 = vld [vmem:[%s268 + $0x30] sm:$0xff]
          %v470 = vld [vmem:[%s268 + $0x38] sm:$0xff]
          %v471 = vld [vmem:[%s268 + $0x40] sm:$0xff]
          %v472 = vld [vmem:[%s268 + $0x48] sm:$0xff]
          %v473 = vld [vmem:[%s268 + $0x50] sm:$0xff]
          %v474 = vld [vmem:[%s268 + $0x58] sm:$0xff]
          %v475 = vld [vmem:[%s268 + $0x60] sm:$0xff]
          %v476 = vld [vmem:[%s268 + $0x68] sm:$0xff]
          %v477 = vld [vmem:[%s268 + $0x70] sm:$0xff]
          %v478 = vld [vmem:[%s268 + $0x78] sm:$0xff]
          %v479 = vmul.f32 %v446, 0.17677669
          %vm480 = vcmask 261120
          %v482 = vsel %vm480, %v479, 0
          %v485 = vsel %vm480, %v447, 0
          %v488 = vsel %vm480, %v448, 0
          %v491 = vsel %vm480, %v449, 0
          %v494 = vsel %vm480, %v450, 0
          %v497 = vsel %vm480, %v451, 0
          %v500 = vsel %vm480, %v452, 0
          %v503 = vsel %vm480, %v453, 0
          %v506 = vsel %vm480, %v454, 0
          %v509 = vsel %vm480, %v455, 0
          %v512 = vsel %vm480, %v456, 0
          %v515 = vsel %vm480, %v457, 0
          %v518 = vsel %vm480, %v458, 0
          %v521 = vsel %vm480, %v459, 0
          %v524 = vsel %vm480, %v460, 0
          %v527 = vsel %vm480, %v461, 0
          %v530 = vsel %vm480, %v462, 0
          %532 = vmatpush.xpose.msra.mxu0 %v530
          %533 = vmatpush.xpose.msra.mxu0 %v527
          %534 = vmatpush.xpose.msra.mxu0 %v524
          %535 = vmatpush.xpose.msra.mxu0 %v521
          %536 = vmatpush.xpose.msra.mxu0 %v518
          %537 = vmatpush.xpose.msra.mxu0 %v515
          %538 = vmatpush.xpose.msra.mxu0 %v512
          %539 = vmatpush.xpose.msra.mxu0 %v509
          %540 = vmatpush.xpose.msra.mxu0 %v506
          %541 = vmatpush.xpose.msra.mxu0 %v503
          %542 = vmatpush.xpose.msra.mxu0 %v500
          %543 = vmatpush.xpose.msra.mxu0 %v497
          %544 = vmatpush.xpose.msra.mxu0 %v494
          %545 = vmatpush.xpose.msra.mxu0 %v491
          %546 = vmatpush.xpose.msra.mxu0 %v488
          %547 = vmatpush.xpose.msra.mxu0 %v485
          %548 = vmatmul.f32.gmra.mxu0 %v482
          %v549 = vpop.f32.mrf.mxu0
          %v550 = vadd.f32 0.0, %v549
          %551 = vdwg.mxu0
          %v552 = vld [vmem:[#allocation2] sm:$0xff]
          %553 = vmax.xlane.f32.xlu0 %v550
          %v554 = vpop.xlane.xlu0 %553
          %v555 = vmax.f32 %v552, %v554
          %v556 = vsub.f32 %v552, %v555
          %v557 = vmul.f32 %v556, 1.442695
          %v558 = vpow.pop %v557
          %560 = vset.pattern.permute.xlu0 0
          %561 = vperm.xlu0 %560, %v555
          %v562 = vpop.permute.xlu0 %561
          %v564 = vsub.f32 %v550, %v562
          %v565 = vmul.f32 %v564, 1.442695
          %v566 = vpow.pop %v565
          %v567 = vld [vmem:[#allocation3] sm:$0xff]
          %v568 = vmul.f32 %v558, %v567
          %569 = vadd.xlane.f32.xlu0 %v566
          %v570 = vpop.xlane.xlu0 %569
          %v571 = vadd.f32 %v568, %v570
          %vm572 = vcmask 7168
          %573 = vst.msk [vmem:[#allocation3] sm:$0xff] %vm572, %v571
          %v574 = vld [vmem:[#allocation4] sm:$0xff]
          %576 = vset.pattern.permute.xlu0 0
          %577 = vperm.xlu0 %576, %v558
          %v578 = vpop.permute.xlu0 %577
          %v580 = vmul.f32 %v578, %v574
          %581 = vmatpush.msra.mxu0 %v478
          %582 = vmatpush.msra.mxu0 %v477
          %583 = vmatpush.msra.mxu0 %v476
          %584 = vmatpush.msra.mxu0 %v475
          %585 = vmatpush.msra.mxu0 %v474
          %586 = vmatpush.msra.mxu0 %v473
          %587 = vmatpush.msra.mxu0 %v472
          %588 = vmatpush.msra.mxu0 %v471
          %589 = vmatpush.msra.mxu0 %v470
          %590 = vmatpush.msra.mxu0 %v469
          %591 = vmatpush.msra.mxu0 %v468
          %592 = vmatpush.msra.mxu0 %v467
          %593 = vmatpush.msra.mxu0 %v466
          %594 = vmatpush.msra.mxu0 %v465
          %595 = vmatpush.msra.mxu0 %v464
          %596 = vmatpush.msra.mxu0 %v463
          %597 = vmatmul.f32.gmra.mxu0 %v566
          %v598 = vpop.f32.mrf.mxu0
          %v599 = vadd.f32 0.0, %v598
          %600 = vdwg.mxu0
          %v601 = vadd.f32 %v580, %v599
          %602 = vst.msk [vmem:[#allocation4] sm:$0xff] %vm480, %v601
          %603 = vst.msk [vmem:[#allocation2] sm:$0xff] %vm572, %v555
        $region40: #{tpu_custom_call.1} parent=31 // pred_fallthru
          _
        // Predicated region
        $region41: #{tpu_custom_call.1} parent=31 // pred_check
          %p604 = pneg %p270
        $region42: #{tpu_custom_call.1} parent=31 // pred_check_branch
          %606 = sbr.rel (%p604) target = $region44
        $region43: #{tpu_custom_call.1} parent=31 // pred_region
          %v607 = vld [vmem:[#allocation3] sm:$0xff]
          %v608 = vrcp.pop %v607
          %v609 = vld [vmem:[#allocation4] sm:$0xff]
          %611 = vset.pattern.permute.xlu0 0
          %612 = vperm.xlu0 %611, %v608
          %v613 = vpop.permute.xlu0 %612
          %v615 = vmul.f32 %v609, %v613
          %vm616 = vcmask 261120
          %617 = vst.msk [vmem:[%s242] sm:$0xff] %vm616, %v615
        $region44: #{tpu_custom_call.1} parent=31 // pred_fallthru
          _
        %s618 = sand.u32 %s130, 1
        %s619 = scalar_lea.sflag [#allocation6], %s618
        %s620 = sand.u32 %s130, 1
        %s621 = smul.addr %s620, 8
        %s622 = scalar_lea.vmem [#allocation5], %s621
        // Predicated region
        $region45: #{tpu_custom_call.1} parent=31 // pred_check
          %p623 = pneg %p140
        $region46: #{tpu_custom_call.1} parent=31 // pred_check_branch
          %625 = sbr.rel (%p623) target = $region48
        $region47: #{tpu_custom_call.1} parent=31 // pred_region
          %627 = vsyncadd %s619, 0
          %s628 = sadd.s32 %s23, %s22
          %s629 = smul.addr %s628, 8
          %s630 = scalar_lea.hbm %s3, %s629
          %s632 = sshll.u32 %s622, 4
          %s633 = int_to_ptr.vmem [resolvable:$true] %s632
          %s634 = sshll.u32 %s630, 4
          %s635 = int_to_ptr.hbm [resolvable:$true] %s634
          %637 = dma.vmem_to_hbm [thread:$0]  %s633, 128, %s635, %s619
        $region48: #{tpu_custom_call.1} parent=31 // pred_fallthru
          _
      $region32: #{tpu_custom_call.1} parent=5 // pred_fallthru
        _
      %p638 = scmp.le.s32.totalorder 2, %s12
      // Predicated region
      $region49: #{tpu_custom_call.1} parent=5 // pred_check
        %p639 = pneg %p638
      $region50: #{tpu_custom_call.1} parent=5 // pred_check_branch
        %641 = sbr.rel (%p639) target = $region52
      $region51: #{tpu_custom_call.1} parent=5 // pred_region
        %s642 = ssub.s32 %s12, 2
        // Predicated region
        $region53: #{tpu_custom_call.1} parent=51 // pred_check
          %p643 = pneg %p146
        $region54: #{tpu_custom_call.1} parent=51 // pred_check_branch
          %645 = sbr.rel (%p643) target = $region56
        $region55: #{tpu_custom_call.1} parent=51 // pred_region
          %s646 = sand.u32 %s131, 1
          %s647 = scalar_lea.sflag [#allocation6], %s646
          %s648 = sand.u32 %s131, 1
          %s649 = smul.addr %s648, 8
          %s650 = scalar_lea.vmem [#allocation5], %s649
          %652 = dma.done %s647, 128
        $region56: #{tpu_custom_call.1} parent=51 // pred_fallthru
          _
      $region52: #{tpu_custom_call.1} parent=5 // pred_fallthru
        _
    $region6: #{tpu_custom_call.1} parent=1 // loop_footer
      %s16 = sadd.s32 1, %s12
    $region7: #{tpu_custom_call.1} parent=1 // loop_footer_branch
      %11 = sbr.rel target = $region3
    $region8: #{tpu_custom_call.1} parent=1 // loop_exit
      _
    %653 = vsyncpa [#allocation6], 1
    %s654 = scalar_lea.sflag [#allocation6], 1
    %655 = vsyncpa %s654, 1

</llo_original>
